<compile_context>
chip_gen: v6e
topology: v6e:2x2x1
jax: 0.10.0
libtpu: 0.0.40
codegen_flags: <defaults>
</compile_context>

<pallas_src>
import functools

import jax
import jax.numpy as jnp
from jax.experimental import pallas as pl
from jax.experimental.pallas import tpu as pltpu


def random_policy_kernel(seed_ref, out_ref, *, no_actions):
    """Writes one lane-dense (row_tile, lanes) f32 tile:
       out[:, :no_actions]   = normalized Categorical probs
       out[:, no_actions]    = vpred_ext  (uniform [0,1))
       out[:, no_actions+1]  = vpred_int  (uniform [0,1))
       remaining lanes       = unused uniforms (ignored by the wrapper)."""
    rows, lanes = out_ref.shape                       # (row_tile, lanes)
    pid = pl.program_id(0)
    seed_u = seed_ref[0].astype(jnp.uint32)

    # Global element counter, unique across grid tiles. (Wraps past 2^32
    # elements per call — unreachable at sane batch sizes.)
    local_row = jax.lax.broadcasted_iota(jnp.int32, (rows, lanes), 0)
    col = jax.lax.broadcasted_iota(jnp.int32, (rows, lanes), 1)
    global_row = pid * rows + local_row
    idx = (global_row * lanes + col).astype(jnp.uint32)

    # Counter-based hash, trimmed to 2 integer multiplies (low-grade PRNG,
    # fine for a random policy; value-head lanes share the same stream).
    x = (idx + jnp.uint32(1)) * jnp.uint32(0x9E3779B9) + seed_u
    x = x ^ (x >> jnp.uint32(16))
    x = x * jnp.uint32(0x7FEB352D)
    x = x ^ (x >> jnp.uint32(15))

    # uint32 bits -> float32 uniform in [0,1) via top 23 bits.
    u = (x >> jnp.uint32(9)).astype(jnp.int32).astype(jnp.float32) \
        * jnp.float32(1.0 / (1 << 23))

    # Categorical(probs=rand(B, no_actions)) normalizes over the action axis;
    # restrict the reduction to the action lanes via a lane mask.
    is_action = col < no_actions
    masked = jnp.where(is_action, u, jnp.float32(0.0))
    denom = jnp.maximum(jnp.sum(masked, axis=-1, keepdims=True),
                        jnp.float32(1e-30))           # guard: all-zero draw
    probs = masked * pl.reciprocal(denom, approx=False)   # EUP, not VALU divide

    # Action lanes get normalized probs; the rest keep raw uniforms
    # (lanes no_actions / no_actions+1 are the two value heads).
    out_ref[...] = jnp.where(is_action, probs, u)


@functools.partial(jax.jit, static_argnames=("no_actions",))
def random_policy_forward(obs_image, memory, no_actions, seed):
    """Mirrors RandomPolicy.forward: returns (probs, (vpred_ext, vpred_int), memory)."""
    batch = obs_image.shape[0]              # obs.image.size(0) — only use of obs

    # Lane-dense output width: >= 128, multiple of 128, >= no_actions + 2.
    lanes = max(128, pl.cdiv(no_actions + 2, 128) * 128)

    # Sublane (batch) padding to a multiple of 8 -> unmasked full-vreg stores.
    # Row tile: up to 512 rows per grid step (>= 85% HBM roofline at scale),
    # clamped down for toy batches; always a multiple of 8.
    row_tile = max(8, min(512, pl.cdiv(batch, 8) * 8))
    b_pad = pl.cdiv(batch, row_tile) * row_tile
    n_tiles = b_pad // row_tile
    # Double-buffered (row_tile, lanes) f32 output = row_tile*lanes*4*2 bytes:
    # at row_tile=512, lanes=128 that is 512 KiB — far inside the scoped VMEM
    # budget on all of v5e/v6e/v7x.

    seed_arr = jnp.asarray(seed, dtype=jnp.int32).reshape((1,))

    slab = pl.pallas_call(
        functools.partial(random_policy_kernel, no_actions=no_actions),
        out_shape=jax.ShapeDtypeStruct((b_pad, lanes), jnp.float32),
        grid_spec=pltpu.PrefetchScalarGridSpec(
            num_scalar_prefetch=1,                    # seed -> SMEM
            grid=(n_tiles,),
            in_specs=[],
            out_specs=pl.BlockSpec((row_tile, lanes), lambda i, seed: (i, 0)),
        ),
        compiler_params=pltpu.CompilerParams(
            dimension_semantics=("parallel",),        # v7x: shard across 2 TCs
        ),
    )(seed_arr)

    # Slices fuse with the pallas_call under this jit — no extra dispatches.
    probs = slab[:batch, :no_actions]
    vpred_ext = slab[:batch, no_actions]
    vpred_int = slab[:batch, no_actions + 1]
    # memory is an identity in the PyTorch forward: return it directly,
    # no HBM round-trip through the kernel.
    return probs, (vpred_ext, vpred_int), memory


if __name__ == "__main__":
    key = jax.random.PRNGKey(0)
    k_obs, k_mem, k_aux = jax.random.split(key, 3)

    batch, no_actions, mem_size = 4, 8, 32

    # Synthetic observation image (NCHW) — only the batch dim is used.
    obs_image = jax.random.normal(k_obs, (batch, 4, 16, 16), dtype=jnp.float32)
    memory = jax.random.normal(k_mem, (batch, mem_size), dtype=jnp.float32)

    # self.aux = nn.Linear(10, 10): parameters exist but are never applied in
    # forward; created for shape fidelity only.
    aux_w = jax.random.normal(k_aux, (10, 10), dtype=jnp.float32) * 0.1
    aux_b = jnp.zeros((10,), dtype=jnp.float32)

    probs, (vpred_ext, vpred_int), mem_out = random_policy_forward(
        obs_image, memory, no_actions, 0)
    jax.block_until_ready((probs, vpred_ext, vpred_int, mem_out))

    # Shape / semantics checks matching the PyTorch forward.
    assert probs.shape == (batch, no_actions)
    assert vpred_ext.shape == (batch,) and vpred_int.shape == (batch,)
    assert mem_out.shape == memory.shape
    assert bool(jnp.allclose(jnp.sum(probs, axis=-1), 1.0, atol=1e-5))   # Categorical normalization
    assert bool(jnp.all((probs >= 0.0) & (probs <= 1.0)))
    assert bool(jnp.all((vpred_ext >= 0.0) & (vpred_ext < 1.0)))
    assert bool(jnp.all((vpred_int >= 0.0) & (vpred_int < 1.0)))
    assert bool(jnp.allclose(mem_out, memory))                            # memory pass-through

    print("KERNEL_OK")
</pallas_src>

<mosaic_0001>
module attributes {stable_mosaic.version = 11 : i64} {
  func.func @random_policy_kernel(%arg0: i32, %arg1: memref<1xi32, #tpu.memory_space<smem>>, %arg2: memref<8x128xf32, #tpu.memory_space<vmem>>) attributes {dimension_semantics = [#tpu.dimension_semantics<parallel>], iteration_bounds = array<i64: 1>, scalar_prefetch = 1 : i64, scratch_operands = 0 : i64, tpu.core_type = #tpu.core_type<tc>, window_params = [{transform_indices = @transform_0, window_bounds = array<i64: 8, 128>}]} {
    %c0 = arith.constant 0 : index
    %0 = memref.load %arg1[%c0] : memref<1xi32, #tpu.memory_space<smem>>
    %1 = tpu.iota {dimensions = array<i32: 0>} : vector<8x128xi32>
    %2 = tpu.iota {dimensions = array<i32: 1>} : vector<8x128xi32>
    %c8_i32 = arith.constant 8 : i32
    %3 = arith.muli %arg0, %c8_i32 : i32
    %4 = vector.broadcast %3 : i32 to vector<8x128xi32>
    %5 = arith.addi %4, %1 : vector<8x128xi32>
    %c128_i32 = arith.constant 128 : i32
    %6 = vector.broadcast %c128_i32 : i32 to vector<8x128xi32>
    %7 = arith.muli %5, %6 : vector<8x128xi32>
    %8 = arith.addi %7, %2 : vector<8x128xi32>
    %c1_i32 = arith.constant 1 : i32
    %9 = vector.broadcast %c1_i32 : i32 to vector<8x128xi32>
    %10 = arith.addi %8, %9 : vector<8x128xi32>
    %c-1640531527_i32 = arith.constant -1640531527 : i32
    %11 = vector.broadcast %c-1640531527_i32 : i32 to vector<8x128xi32>
    %12 = arith.muli %10, %11 : vector<8x128xi32>
    %13 = vector.broadcast %0 : i32 to vector<8x128xi32>
    %14 = arith.addi %12, %13 : vector<8x128xi32>
    %c16_i32 = arith.constant 16 : i32
    %15 = vector.broadcast %c16_i32 : i32 to vector<8x128xi32>
    %16 = arith.shrui %14, %15 : vector<8x128xi32>
    %17 = arith.xori %14, %16 : vector<8x128xi32>
    %c2146121005_i32 = arith.constant 2146121005 : i32
    %18 = vector.broadcast %c2146121005_i32 : i32 to vector<8x128xi32>
    %19 = arith.muli %17, %18 : vector<8x128xi32>
    %c15_i32 = arith.constant 15 : i32
    %20 = vector.broadcast %c15_i32 : i32 to vector<8x128xi32>
    %21 = arith.shrui %19, %20 : vector<8x128xi32>
    %22 = arith.xori %19, %21 : vector<8x128xi32>
    %c9_i32 = arith.constant 9 : i32
    %23 = vector.broadcast %c9_i32 : i32 to vector<8x128xi32>
    %24 = arith.shrui %22, %23 : vector<8x128xi32>
    %25 = arith.sitofp %24 : vector<8x128xi32> to vector<8x128xf32>
    %cst = arith.constant 1.1920929E-7 : f32
    %26 = vector.broadcast %cst : f32 to vector<8x128xf32>
    %27 = arith.mulf %25, %26 : vector<8x128xf32>
    %c8_i32_0 = arith.constant 8 : i32
    %28 = vector.broadcast %c8_i32_0 : i32 to vector<8x128xi32>
    %29 = arith.cmpi slt, %2, %28 : vector<8x128xi32>
    %cst_1 = arith.constant 0.000000e+00 : f32
    %30 = vector.broadcast %cst_1 : f32 to vector<8x128xf32>
    %31 = arith.select %29, %27, %30 : vector<8x128xi1>, vector<8x128xf32>
    %cst_2 = arith.constant dense<0.000000e+00> : vector<8xf32>
    %32 = vector.multi_reduction <add>, %31, %cst_2 [1] : vector<8x128xf32> to vector<8xf32>
    %33 = vector.shape_cast %32 : vector<8xf32> to vector<8x1xf32>
    %cst_3 = arith.constant 1.000000e-30 : f32
    %34 = vector.broadcast %cst_3 : f32 to vector<8x1xf32>
    %35 = arith.maximumf %33, %34 : vector<8x1xf32>
    %36 = tpu.reciprocal %35 : vector<8x1xf32> -> vector<8x1xf32>
    %37 = vector.broadcast %36 : vector<8x1xf32> to vector<8x128xf32>
    %38 = arith.mulf %31, %37 : vector<8x128xf32>
    %39 = arith.select %29, %38, %27 : vector<8x128xi1>, vector<8x128xf32>
    %c0_4 = arith.constant 0 : index
    %c0_5 = arith.constant 0 : index
    %40 = vector.load %arg2[%c0_4, %c0_5] : memref<8x128xf32, #tpu.memory_space<vmem>>, vector<8x128xf32>
    tpu.vector_store %arg2[%c0_4, %c0_5], %39 {strides = array<i32>} : memref<8x128xf32, #tpu.memory_space<vmem>>, vector<8x128xf32>,
    return
  }
  func.func @transform_0(%arg0: i32, %arg1: memref<1xi32, #tpu.memory_space<smem>>) -> (i32, i32) {
    %c0_i32 = arith.constant 0 : i32
    %c0_i32_0 = arith.constant 0 : i32
    return %arg0, %c0_i32 : i32, i32
  }
}

</mosaic_0001>

<llo_original>
// kernel: random_policy_forward.1
$region0: #{random_policy_forward.1}
  #allocation0 [shape = 'u32[]', space=smem, size = 0x4, offset = 0x4, fixed_abs, tag = 'smem constant byte address 0x4 - core index']
  #allocation1 [shape = 'u32[144,128]{1,0:T(1,128)}', space=vmem, size = 0x12000, scoped, tag = 'internal scratch']
  #allocation2 [shape = 's32[1]{0}', space=sflag, size = 0x4, scoped, tag = 'scoped memory for random_policy_forward.1']
  #allocation3 [shape = 's32[1]{0:T(128)S(6)}', space=smem, size = 0x200, scoped, tag = 'prefetched SMEM operand 0']
  %s0 = inlined_call_operand.<no memory space> [shape: s32[1], index: 0, kind: input, shape index: {}]
  %s1 = inlined_call_operand.vmem [shape: f32[8,128], index: 1, kind: output, shape index: {}]
  %s2 = sld [smem:[#allocation0]]
  $region10: #{random_policy_forward.1} parent=0
    _
  %s4 = ssub.s32 1, %s2
  %s5 = scalar_select 0, %s4, %s2
  %6 = sst [smem:[#allocation3]] %s0
  %s7 = sld [smem:[#allocation3]]
  %v8 = vlaneseq
  %v9 = vshrl.u32 %v8, 7
  %v10 = vlaneseq
  %v11 = vand.u32 %v10, 127
  %s12 = smul.u32 0, 8
  %v13 = vstv %s12
  %v14 = vadd.s32 %v13, %v9
  %v15 = vmul.u32 %v14, 128
  %v16 = vadd.s32 %v15, %v11
  %v17 = vadd.s32 %v16, 1
  %v18 = vmul.u32 %v17, 2654435769
  %v19 = vstv %s7
  %v20 = vadd.s32 %v18, %v19
  %v21 = vshrl.u32 %v20, 16
  %v22 = vxor.u32 %v20, %v21
  %v23 = vmul.u32 %v22, 2146121005
  %v24 = vshrl.u32 %v23, 15
  %v25 = vxor.u32 %v23, %v24
  %v26 = vshrl.u32 %v25, 9
  %v27 = vcvt.s32.f32 %v26
  %v28 = vmul.f32 %v27, 1.1920929e-07
  %vm29 = vcmp.lt.s32.totalorder %v11, 8
  %v30 = vsel %vm29, %v28, 0.0
  %31 = vadd.xlane.f32.xlu0 %v30
  %v32 = vpop.xlane.xlu0 %31
  %v33 = vmax.f32 %v32, 1e-30
  %v34 = vrcp.pop %v33
  %v35 = vmul.f32 %v30, %v34
  %v36 = vsel %vm29, %v35, %v28
  %37 = vst [vmem:[%s1] sm:$0xff] %v36
  // Predicated region
  $region2: #{random_policy_forward.1} parent=0 // pred_check
    _
  $region3: #{random_policy_forward.1} parent=0 // pred_check_branch
    %39 = sbr.rel (0) target = $region5
  $region4: #{random_policy_forward.1} parent=0 // pred_region
    _
  $region5: #{random_policy_forward.1} parent=0 // pred_fallthru
    _
  // Predicated region
  $region6: #{random_policy_forward.1} parent=0 // pred_check
    _
  $region7: #{random_policy_forward.1} parent=0 // pred_check_branch
    %41 = sbr.rel (0) target = $region9
  $region8: #{random_policy_forward.1} parent=0 // pred_region
    _
  $region9: #{random_policy_forward.1} parent=0 // pred_fallthru
    _

</llo_original>
